<compile_context>
chip_gen: v6e
topology: v6e:2x2x1
jax: 0.10.0
libtpu: 0.0.40
codegen_flags: <defaults>
</compile_context>

<pallas_src>
import functools

import jax
import jax.numpy as jnp
import numpy as np
from jax.experimental import pallas as pl
from jax.experimental.pallas import tpu as pltpu


def _head_eval_kernel(x_ref, wt_ref, b_ref, o_ref):
    """Eval mode: dropout is identity -> out_proj (MXU matmul + bias)."""
    acc = jnp.dot(x_ref[...], wt_ref[...], preferred_element_type=jnp.float32)
    o_ref[...] = (acc + b_ref[...].astype(jnp.float32)).astype(o_ref.dtype)


def _head_train_kernel(x_ref, keep_ref, wt_ref, b_ref, o_ref, *, inv_keep_prob):
    """Train mode: inverted dropout (int8 keep mask) + out_proj.

    The 1/(1-p) rescale is folded into the [TM, L] post-matmul accumulator,
    which is much cheaper than scaling the [TM, D] activations and keeps the
    dropout path to a single select per element."""
    x = x_ref[...]
    x = jnp.where(keep_ref[...] != 0, x, jnp.zeros((), dtype=x.dtype))
    acc = jnp.dot(x, wt_ref[...], preferred_element_type=jnp.float32)
    acc = acc * jnp.float32(inv_keep_prob) + b_ref[...].astype(jnp.float32)
    o_ref[...] = acc.astype(o_ref.dtype)


def enct5_classification_head(
    hidden_states: jax.Array,   # [B, S, D]
    weight_t: jax.Array,        # [D, L]  (nn.Linear weight, pre-transposed once)
    bias: jax.Array,            # [L]
    *,
    dropout_p: float = 0.0,
    training: bool = False,
    dropout_rng: jax.Array | None = None,
    block_rows: int = 1024,
) -> jax.Array:                 # [B, S, L]
    B, S, D = hidden_states.shape
    Dw, L = weight_t.shape
    assert Dw == D, "weight_t must have shape [d_model, num_labels]"

    N = B * S
    x2d = hidden_states.reshape(N, D)
    b2d = bias.reshape(1, L)

    # Token-axis tile: full array when small, otherwise block_rows rows
    # (multiple of 32 so f32/bf16/int8 tiles are all legal; Pallas masks the
    # edge block when N is not a multiple of tm).
    tm = N if N <= block_rows else block_rows
    grid = (pl.cdiv(N, tm),)

    x_spec = pl.BlockSpec((tm, D), lambda i: (i, 0))
    m_spec = pl.BlockSpec((tm, D), lambda i: (i, 0))
    w_spec = pl.BlockSpec((D, L), lambda i: (0, 0))   # resident across the grid
    b_spec = pl.BlockSpec((1, L), lambda i: (0, 0))   # resident across the grid
    o_spec = pl.BlockSpec((tm, L), lambda i: (i, 0))
    out_shape = jax.ShapeDtypeStruct((N, L), hidden_states.dtype)
    compiler_params = pltpu.CompilerParams(dimension_semantics=("parallel",))

    if (not training) or dropout_p == 0.0:
        out = pl.pallas_call(
            _head_eval_kernel,
            out_shape=out_shape,
            grid=grid,
            in_specs=[x_spec, w_spec, b_spec],
            out_specs=o_spec,
            compiler_params=compiler_params,
        )(x2d, weight_t, b2d)
    else:
        if dropout_rng is None:
            dropout_rng = jax.random.PRNGKey(0)
        # TODO(synk): on real hardware the keep mask could be drawn in-kernel
        # with pltpu.prng_seed/prng_random_bits (per-tile seeded), eliminating
        # this [N, D] int8 HBM stream; those primitives have no CPU/interpret
        # lowering in this environment, so the mask is generated host-side.
        keep = jax.random.bernoulli(
            dropout_rng, 1.0 - float(dropout_p), (N, D)
        ).astype(jnp.int8)
        kernel = functools.partial(
            _head_train_kernel, inv_keep_prob=1.0 / (1.0 - float(dropout_p))
        )
        out = pl.pallas_call(
            kernel,
            out_shape=out_shape,
            grid=grid,
            in_specs=[x_spec, m_spec, w_spec, b_spec],
            out_specs=o_spec,
            compiler_params=compiler_params,
        )(x2d, keep, weight_t, b2d)

    return out.reshape(B, S, L)


if __name__ == "__main__":
    # Small config consistent with EncT5Config: d_model=32, num_labels=4,
    # classifier_dropout=0.1; inputs: batch=2, seq=8.
    B, S, D, L = 2, 8, 32, 4
    dropout_p = 0.1

    key = jax.random.PRNGKey(0)
    k_x, k_w, k_b, k_drop = jax.random.split(key, 4)
    hidden_states = jax.random.normal(k_x, (B, S, D), dtype=jnp.float32)
    weight = jax.random.normal(k_w, (L, D), dtype=jnp.float32) * 0.02   # PyTorch [L, D]
    bias = jax.random.normal(k_b, (L,), dtype=jnp.float32) * 0.02

    # One-time parameter prep (hoisted out of the per-call path): [D, L] weight.
    weight_t = jnp.asarray(weight.T)

    # --- Eval-mode forward (dropout is identity): check against pure-JAX reference.
    out_eval = enct5_classification_head(
        hidden_states, weight_t, bias, dropout_p=dropout_p, training=False
    )
    out_eval = jax.block_until_ready(out_eval)
    ref_eval = hidden_states.reshape(B * S, D) @ weight.T + bias
    np.testing.assert_allclose(
        np.asarray(out_eval).reshape(B * S, L), np.asarray(ref_eval),
        rtol=1e-5, atol=1e-5,
    )

    # --- Train-mode forward (inverted dropout): check against pure-JAX reference
    #     built from the same deterministic mask.
    out_train = enct5_classification_head(
        hidden_states, weight_t, bias,
        dropout_p=dropout_p, training=True, dropout_rng=k_drop,
    )
    out_train = jax.block_until_ready(out_train)
    assert out_train.shape == (B, S, L)
    keep_mask = jax.random.bernoulli(k_drop, 1.0 - dropout_p, (B * S, D))
    x_drop = jnp.where(
        keep_mask, hidden_states.reshape(B * S, D) / (1.0 - dropout_p), 0.0
    )
    ref_train = x_drop @ weight.T + bias
    np.testing.assert_allclose(
        np.asarray(out_train).reshape(B * S, L), np.asarray(ref_train),
        rtol=1e-5, atol=1e-5,
    )
    assert bool(jnp.all(jnp.isfinite(out_train)))

    print("KERNEL_OK")
</pallas_src>

<mosaic_0001>
module attributes {stable_mosaic.version = 11 : i64} {
  func.func @_head_eval_kernel(%arg0: i32, %arg1: memref<16x32xf32, #tpu.memory_space<vmem>>, %arg2: memref<32x4xf32, #tpu.memory_space<vmem>>, %arg3: memref<1x4xf32, #tpu.memory_space<vmem>>, %arg4: memref<16x4xf32, #tpu.memory_space<vmem>>) attributes {dimension_semantics = [#tpu.dimension_semantics<parallel>], iteration_bounds = array<i64: 1>, scalar_prefetch = 0 : i64, scratch_operands = 0 : i64, tpu.core_type = #tpu.core_type<tc>, window_params = [{transform_indices = @transform_0, window_bounds = array<i64: 16, 32>}, {pipeline_mode = #tpu.pipeline_mode<synchronous>, transform_indices = @transform_1, window_bounds = array<i64: 32, 4>}, {pipeline_mode = #tpu.pipeline_mode<synchronous>, transform_indices = @transform_2, window_bounds = array<i64: 1, 4>}, {transform_indices = @transform_3, window_bounds = array<i64: 16, 4>}]} {
    %c0 = arith.constant 0 : index
    %c0_0 = arith.constant 0 : index
    %0 = vector.load %arg1[%c0, %c0_0] : memref<16x32xf32, #tpu.memory_space<vmem>>, vector<16x32xf32>
    %c0_1 = arith.constant 0 : index
    %c0_2 = arith.constant 0 : index
    %1 = vector.load %arg2[%c0_1, %c0_2] : memref<32x4xf32, #tpu.memory_space<vmem>>, vector<32x4xf32>
    %cst = arith.constant dense<0.000000e+00> : vector<16x4xf32>
    %2 = tpu.matmul %0, %1, %cst {dimension_numbers = #tpu.dot_dimension_numbers<[1], [0], [0], [1], [0, 0, 1, 1], [], []>} : vector<16x32xf32>, vector<32x4xf32>, vector<16x4xf32> -> vector<16x4xf32>
    %c0_3 = arith.constant 0 : index
    %c0_4 = arith.constant 0 : index
    %3 = vector.load %arg3[%c0_3, %c0_4] : memref<1x4xf32, #tpu.memory_space<vmem>>, vector<1x4xf32>
    %4 = vector.broadcast %3 : vector<1x4xf32> to vector<16x4xf32>
    %5 = arith.addf %2, %4 : vector<16x4xf32>
    %c0_5 = arith.constant 0 : index
    %c0_6 = arith.constant 0 : index
    %6 = vector.load %arg4[%c0_5, %c0_6] : memref<16x4xf32, #tpu.memory_space<vmem>>, vector<16x4xf32>
    tpu.vector_store %arg4[%c0_5, %c0_6], %5 {strides = array<i32>} : memref<16x4xf32, #tpu.memory_space<vmem>>, vector<16x4xf32>,
    return
  }
  func.func @transform_0(%arg0: i32) -> (i32, i32) {
    %c0_i32 = arith.constant 0 : i32
    %c0_i32_0 = arith.constant 0 : i32
    return %arg0, %c0_i32 : i32, i32
  }
  func.func @transform_1(%arg0: i32) -> (i32, i32) {
    %c0_i32 = arith.constant 0 : i32
    %c0_i32_0 = arith.constant 0 : i32
    %c0_i32_1 = arith.constant 0 : i32
    return %c0_i32, %c0_i32_0 : i32, i32
  }
  func.func @transform_2(%arg0: i32) -> (i32, i32) {
    %c0_i32 = arith.constant 0 : i32
    %c0_i32_0 = arith.constant 0 : i32
    %c0_i32_1 = arith.constant 0 : i32
    return %c0_i32, %c0_i32_0 : i32, i32
  }
  func.func @transform_3(%arg0: i32) -> (i32, i32) {
    %c0_i32 = arith.constant 0 : i32
    %c0_i32_0 = arith.constant 0 : i32
    return %arg0, %c0_i32 : i32, i32
  }
}

</mosaic_0001>

<llo_original>
// kernel: tpu_custom_call.1
$region0: #{tpu_custom_call.1}
  #allocation0 [shape = 'u32[]', space=smem, size = 0x4, offset = 0x4, fixed_abs, tag = 'smem constant byte address 0x4 - core index']
  #allocation1 [shape = 'u32[144,128]{1,0:T(1,128)}', space=vmem, size = 0x12000, scoped, tag = 'internal scratch']
  %s0 = inlined_call_operand.vmem [shape: f32[16,32], index: 0, kind: input, shape index: {}]
  %s1 = inlined_call_operand.vmem [shape: f32[32,4], index: 1, kind: input, shape index: {}]
  %s2 = inlined_call_operand.vmem [shape: f32[1,4], index: 2, kind: input, shape index: {}]
  %s3 = inlined_call_operand.vmem [shape: f32[16,4], index: 3, kind: output, shape index: {}]
  %s4 = sld [smem:[#allocation0]]
  $region22: #{tpu_custom_call.1} parent=0
    _
  %s6 = ssub.s32 1, %s4
  %s7 = scalar_select 0, %s6, %s4
  // Predicated region
  $region2: #{tpu_custom_call.1} parent=0 // pred_check
    _
  $region3: #{tpu_custom_call.1} parent=0 // pred_check_branch
    %9 = sbr.rel (0) target = $region5
  $region4: #{tpu_custom_call.1} parent=0 // pred_region
    _
  $region5: #{tpu_custom_call.1} parent=0 // pred_fallthru
    _
  // Predicated region
  $region6: #{tpu_custom_call.1} parent=0 // pred_check
    _
  $region7: #{tpu_custom_call.1} parent=0 // pred_check_branch
    %11 = sbr.rel (0) target = $region9
  $region8: #{tpu_custom_call.1} parent=0 // pred_region
    _
  $region9: #{tpu_custom_call.1} parent=0 // pred_fallthru
    _
  // Predicated region
  $region10: #{tpu_custom_call.1} parent=0 // pred_check
    _
  $region11: #{tpu_custom_call.1} parent=0 // pred_check_branch
    %13 = sbr.rel (0) target = $region13
  $region12: #{tpu_custom_call.1} parent=0 // pred_region
    _
  $region13: #{tpu_custom_call.1} parent=0 // pred_fallthru
    _
  %v14 = vld [vmem:[%s0] sm:$0xff]
  %v15 = vld [vmem:[%s0 + $0x8] sm:$0xff]
  %v16 = vld [vmem:[%s1] sm:$0xff]
  %v17 = vld [vmem:[%s1 + $0x8] sm:$0xff]
  %v18 = vld [vmem:[%s1 + $0x10] sm:$0xff]
  %v19 = vld [vmem:[%s1 + $0x18] sm:$0xff]
  %v20 = vld [vmem:[%s2] sm:$0x1]
  %v22 = vlaneseq
  %v23 = vshrl.u32 %v22, 7
  %v24 = vsub.s32 0, %v23
  %v25 = vrot.slane %v20, %v24
  %vm27 = vcmask 261120
  %v29 = vsel %vm27, %v14, 0
  %v32 = vsel %vm27, %v15, 0
  %34 = vmatprep.subr.mxu0 0.0
  %35 = vmatpush1.msra.mxu0 0.0
  %36 = vmatprep.subr.mxu0 0.0
  %37 = vmatpush1.msra.mxu0 0.0
  %38 = vmatprep.subr.mxu0 0.0
  %39 = vmatpush1.msra.mxu0 0.0
  %40 = vmatprep.subr.mxu0 0.0
  %41 = vmatpush1.msra.mxu0 0.0
  %42 = vmatprep.subr.mxu0 0.0
  %43 = vmatpush1.msra.mxu0 0.0
  %44 = vmatprep.subr.mxu0 0.0
  %45 = vmatpush1.msra.mxu0 0.0
  %46 = vmatprep.subr.mxu0 0.0
  %47 = vmatpush1.msra.mxu0 0.0
  %48 = vmatprep.subr.mxu0 0.0
  %49 = vmatpush1.msra.mxu0 0.0
  %50 = vmatprep.subr.mxu0 0.0
  %51 = vmatpush1.msra.mxu0 0.0
  %52 = vmatprep.subr.mxu0 0.0
  %53 = vmatpush1.msra.mxu0 0.0
  %54 = vmatprep.subr.mxu0 0.0
  %55 = vmatpush1.msra.mxu0 0.0
  %56 = vmatprep.subr.mxu0 0.0
  %57 = vmatpush1.msra.mxu0 0.0
  %58 = vmatprep.subr.mxu0 0.0
  %59 = vmatpush1.msra.mxu0 %v19
  %60 = vmatprep.subr.mxu0 0.0
  %61 = vmatpush1.msra.mxu0 %v18
  %62 = vmatprep.subr.mxu0 0.0
  %63 = vmatpush1.msra.mxu0 %v17
  %64 = vmatprep.subr.mxu0 0.0
  %65 = vmatpush1.msra.mxu0 %v16
  %66 = vmatprep.subr.mxu0 0.0
  %67 = vmatpush2.msra.mxu0 0.0
  %68 = vmatprep.subr.mxu0 0.0
  %69 = vmatpush2.msra.mxu0 0.0
  %70 = vmatprep.subr.mxu0 0.0
  %71 = vmatpush2.msra.mxu0 0.0
  %72 = vmatprep.subr.mxu0 0.0
  %73 = vmatpush2.msra.mxu0 0.0
  %74 = vmatprep.subr.mxu0 0.0
  %75 = vmatpush2.msra.mxu0 0.0
  %76 = vmatprep.subr.mxu0 0.0
  %77 = vmatpush2.msra.mxu0 0.0
  %78 = vmatprep.subr.mxu0 0.0
  %79 = vmatpush2.msra.mxu0 0.0
  %80 = vmatprep.subr.mxu0 0.0
  %81 = vmatpush2.msra.mxu0 0.0
  %82 = vmatprep.subr.mxu0 0.0
  %83 = vmatpush2.msra.mxu0 0.0
  %84 = vmatprep.subr.mxu0 0.0
  %85 = vmatpush2.msra.mxu0 0.0
  %86 = vmatprep.subr.mxu0 0.0
  %87 = vmatpush2.msra.mxu0 0.0
  %88 = vmatprep.subr.mxu0 0.0
  %89 = vmatpush2.msra.mxu0 0.0
  %90 = vmatprep.subr.mxu0 0.0
  %91 = vmatpush2.msra.mxu0 0.0
  %92 = vmatprep.subr.mxu0 0.0
  %93 = vmatpush2.msra.mxu0 0.0
  %94 = vmatprep.subr.mxu0 0.0
  %95 = vmatpush2.msra.mxu0 0.0
  %96 = vmatprep.subr.mxu0 0.0
  %97 = vmatpush2.msra.mxu0 0.0
  %98 = vmatprep.mubr.f32.mxu0 0.0
  %99 = vmatmul.mubr.f32.gmra.mxu0 %v29
  %v100 = vpop.f32.mrf.mxu0
  %v101 = vadd.f32 %v25, %v100
  %v102 = vpop.f32.mrf.mxu0
  %103 = vmatprep.mubr.f32.mxu0 0.0
  %104 = vmatmul.mubr.f32.gmra.mxu0 %v32
  %v105 = vpop.f32.mrf.mxu0
  %v106 = vadd.f32 %v25, %v105
  %v107 = vpop.f32.mrf.mxu0
  %108 = vdwg.mxu0
  %vm109 = vcmask 31744
  %110 = vst.msk [vmem:[%s3] sm:$0xff] %vm109, %v101
  %111 = vst.msk [vmem:[%s3 + $0x8] sm:$0xff] %vm109, %v106
  // Predicated region
  $region14: #{tpu_custom_call.1} parent=0 // pred_check
    _
  $region15: #{tpu_custom_call.1} parent=0 // pred_check_branch
    %113 = sbr.rel (0) target = $region17
  $region16: #{tpu_custom_call.1} parent=0 // pred_region
    _
  $region17: #{tpu_custom_call.1} parent=0 // pred_fallthru
    _
  // Predicated region
  $region18: #{tpu_custom_call.1} parent=0 // pred_check
    _
  $region19: #{tpu_custom_call.1} parent=0 // pred_check_branch
    %115 = sbr.rel (0) target = $region21
  $region20: #{tpu_custom_call.1} parent=0 // pred_region
    _
  $region21: #{tpu_custom_call.1} parent=0 // pred_fallthru
    _

</llo_original>
